<compile_context>
chip_gen: v6e
topology: v6e:2x2x1
jax: 0.10.0
libtpu: 0.0.40
codegen_flags: <defaults>
</compile_context>

<pallas_src>
import jax
import jax.numpy as jnp
from jax.experimental import pallas as pl
from jax.experimental.pallas import tpu as pltpu

EPS = 1e-5


def _round_up(n, m):
    return (n + m - 1) // m * m


def _take_cols(x, idx):
    """Static contiguous slice when possible, gather otherwise."""
    idx = [int(i) for i in idx]
    if idx == list(range(idx[0], idx[0] + len(idx))):
        return jax.lax.slice_in_dim(x, idx[0], idx[0] + len(idx), axis=1)
    return x[:, jnp.asarray(idx)]


# ----------------------------- fused kernel -----------------------------
def make_kernel(n_enc, n_cls, bias_slots):
    """Transposed, fully-fused forward.  Weight refs are (dout, din) bf16;
    biases live in one packed (rows, 1) f32 slab sliced with static offsets."""

    def kernel(x_ref, *refs):
        out_ref = refs[-1]
        bias_ref = refs[-2]
        w_it = iter(refs[:-2])
        b_it = iter(bias_slots)

        def dense(x):                               # (dout,din)@(din,TB) -> f32
            w = next(w_it)[...]
            off, n = next(b_it)
            b = bias_ref[pl.ds(off, n), :]          # (n, 1), static slice
            return jnp.dot(w, x, preferred_element_type=jnp.float32) + b

        def relu_b16(h):                            # f32 ReLU, bf16 for next MXU
            return jnp.maximum(h, 0.0).astype(jnp.bfloat16)

        h = x_ref[...]                              # (d_in, TB) bf16
        for _ in range(n_enc):                      # block-diag fused encoders
            h = relu_b16(dense(h))
        enc = h                                     # (deep_out+rad_out, TB), >=0

        a = relu_b16(dense(enc))                    # fused attention hidden
        s = dense(a)                                # fused attention logits (f32)
        gate = pl.reciprocal(1.0 + jnp.exp(-s), approx=True)   # sigmoid on EUP
        z = (enc * gate).astype(jnp.bfloat16)       # weighted fused features

        for _ in range(n_cls):                      # classifier hidden (BN folded)
            z = relu_b16(dense(z))

        y = dense(z)                                # (8, TB): final weight padded to 8 rows
        out_ref[...] = y[0:1, :]                    # lane-dense (1, TB) logits

    return kernel


# ----------------------------- parameter init (PyTorch layout) ---------------
def _init_linear(key, din, dout):
    k1, k2 = jax.random.split(key)
    bound = 1.0 / (din ** 0.5)
    w = jax.random.uniform(k1, (dout, din), jnp.float32, -bound, bound)
    b = jax.random.uniform(k2, (dout,), jnp.float32, -bound, bound)
    return w, b


def init_params(key, deep_in, rad_in, deep_dims, rad_dims, attn_dim, cls_dims):
    ki = iter(jax.random.split(key, 256))

    def bn(dim):  # mildly randomized eval-mode BN stats (exercises the folding)
        g = 1.0 + 0.1 * jax.random.normal(next(ki), (dim,), jnp.float32)
        be = 0.1 * jax.random.normal(next(ki), (dim,), jnp.float32)
        m = 0.1 * jax.random.normal(next(ki), (dim,), jnp.float32)
        v = jax.random.uniform(next(ki), (dim,), jnp.float32, 0.8, 1.25)
        return (g, be, m, v)

    def mlp(din, dims):
        layers, last = [], din
        for d in dims:
            w, b = _init_linear(next(ki), last, d)
            layers.append((w, b) + bn(d))
            last = d
        return layers, last

    p = {}
    p["deep_layers"], d_out = mlp(deep_in, deep_dims)
    p["rad_layers"], r_out = mlp(rad_in, rad_dims)

    def attn(dim):
        w1, b1 = _init_linear(next(ki), dim, attn_dim)
        w2, b2 = _init_linear(next(ki), attn_dim, dim)
        return (w1, b1, w2, b2)

    p["deep_attn"] = attn(d_out)
    p["rad_attn"] = attn(r_out)
    p["cls_bn0"] = bn(d_out + r_out)
    p["cls_hidden"], last = mlp(d_out + r_out, cls_dims)
    p["cls_final"] = _init_linear(next(ki), last, 1)
    p["dims"] = (d_out, r_out)
    return p


# ----------------------------- BN folding + branch fusion (build time) -------
def _bn_scale_shift(bn):
    g, be, m, v = bn
    s = g * jax.lax.rsqrt(v + EPS)
    return s, be - m * s


def _fold_out(w, b, bn):      # Linear -> BN   (W: (dout, din))
    s, t = _bn_scale_shift(bn)
    return w * s[:, None], b * s + t


def _fold_in(w, b, bn):       # BN -> Linear
    s, t = _bn_scale_shift(bn)
    return w * s[None, :], b + w @ t


def _block_diag(wd, wr):
    od, idd = wd.shape
    orr, ir = wr.shape
    out = jnp.zeros((od + orr, idd + ir), jnp.float32)
    return out.at[:od, :idd].set(wd).at[od:, idd:].set(wr)


def fold_params(p):
    """Fold eval-mode BN into Linears, fuse branches block-diagonally, pack biases."""
    deep = [_fold_out(w, b, bn) for (w, b, *bn) in p["deep_layers"]]
    rad = [_fold_out(w, b, bn) for (w, b, *bn) in p["rad_layers"]]
    assert len(deep) >= 1 and len(rad) >= 1, "encoders must have >= 1 layer"

    # Pad the shorter branch with identity layers (valid: prior output is post-ReLU >= 0).
    def pad(layers, n):
        d = layers[-1][0].shape[0]
        return layers + [(jnp.eye(d, dtype=jnp.float32),
                          jnp.zeros((d,), jnp.float32))] * n

    n_enc = max(len(deep), len(rad))
    deep = pad(deep, n_enc - len(deep))
    rad = pad(rad, n_enc - len(rad))

    weights, biases = [], []
    for (wd, bd), (wr, br) in zip(deep, rad):               # fused encoders
        weights.append(_block_diag(wd, wr))
        biases.append(jnp.concatenate([bd, br]))

    dw1, db1, dw2, db2 = p["deep_attn"]                     # fused attention
    rw1, rb1, rw2, rb2 = p["rad_attn"]
    weights.append(_block_diag(dw1, rw1)); biases.append(jnp.concatenate([db1, rb1]))
    weights.append(_block_diag(dw2, rw2)); biases.append(jnp.concatenate([db2, rb2]))

    # Classifier: BN0 folds into the first Linear's input side, its own BN into the output side.
    assert len(p["cls_hidden"]) >= 1, "classifier_dims must be non-empty"
    w1, b1, *bn1 = p["cls_hidden"][0]
    w1, b1 = _fold_in(w1, b1, p["cls_bn0"])
    w1, b1 = _fold_out(w1, b1, bn1)
    weights.append(w1); biases.append(b1)
    for (w, b, *bn) in p["cls_hidden"][1:]:
        w, b = _fold_out(w, b, bn)
        weights.append(w); biases.append(b)
    n_cls = len(p["cls_hidden"])

    # Final Linear (last -> 1), zero-padded to 8 output rows (sublane-aligned matmul).
    wf, bf = p["cls_final"]
    wf8 = jnp.zeros((8, wf.shape[1]), jnp.float32).at[0:1, :].set(wf)
    bf8 = jnp.zeros((8,), jnp.float32).at[0].set(bf[0])
    weights.append(wf8); biases.append(bf8)

    # Pack biases into one (rows, 1) f32 slab at 8-aligned sublane offsets.
    bias_slots, off = [], 0
    for b in biases:
        bias_slots.append((off, int(b.shape[0])))
        off += _round_up(int(b.shape[0]), 8)
    bias_pack = jnp.zeros((off, 1), jnp.float32)
    for (o, n), b in zip(bias_slots, biases):
        bias_pack = bias_pack.at[o:o + n, 0].set(b)

    weights = [w.astype(jnp.bfloat16) for w in weights]     # bf16 MXU operands
    return weights, bias_pack, tuple(bias_slots), n_enc, n_cls


# ----------------------------- wrapper -----------------------------
def build_forward(params, deep_indices, rad_indices, *, tb_max=1024):
    """Fold once, build the kernel, return a jitted forward: x (B, F) -> (B, 1)."""
    weights, bias_pack, bias_slots, n_enc, n_cls = fold_params(params)
    kernel = make_kernel(n_enc, n_cls, bias_slots)

    deep_idx = [int(i) for i in deep_indices]
    rad_idx = [int(i) for i in rad_indices]
    all_idx = deep_idx + rad_idx
    contiguous = all_idx == list(range(all_idx[0], all_idx[0] + len(all_idx)))
    d_in = len(all_idx)

    w_shapes = [tuple(int(s) for s in w.shape) for w in weights]
    flops_per_sample = 2 * sum(m * k for (m, k) in w_shapes)
    trans_per_sample = w_shapes[n_enc + 1][0]               # sigmoid exps
    static_bytes = 2 * sum(m * k for (m, k) in w_shapes) + 4 * int(bias_pack.size)

    @jax.jit
    def fwd(x):
        B = x.shape[0]
        if contiguous:
            xin = jax.lax.slice_in_dim(x, all_idx[0], all_idx[0] + d_in, axis=1)
        else:
            xin = jnp.concatenate(
                [_take_cols(x, deep_idx), _take_cols(x, rad_idx)], axis=1)
        xt = xin.astype(jnp.bfloat16).T                     # (d_in, B): batch on lanes

        # Lane-axis batch tiling: TB multiple of 128, <= tb_max; >= 2 tiles
        # when there are enough lanes so v7x's two TensorCores both get work.
        B_lane = _round_up(B, 128)
        TB = min(tb_max, B_lane)
        if B_lane >= 256 and B_lane // TB < 2:
            TB = _round_up(pl.cdiv(B_lane, 2), 128)
        grid_n = pl.cdiv(B_lane, TB)
        B_pad = grid_n * TB
        xt = jnp.pad(xt, ((0, 0), (0, B_pad - B)))

        in_specs = [pl.BlockSpec((d_in, TB), lambda i: (0, i))]
        in_specs += [pl.BlockSpec(s, lambda i: (0, 0)) for s in w_shapes]
        in_specs += [pl.BlockSpec(tuple(bias_pack.shape), lambda i: (0, 0))]

        cost = pl.CostEstimate(
            flops=flops_per_sample * B_pad,
            transcendentals=trans_per_sample * B_pad,
            bytes_accessed=static_bytes + (2 * d_in + 4) * B_pad)

        out = pl.pallas_call(
            kernel,
            out_shape=jax.ShapeDtypeStruct((1, B_pad), jnp.float32),
            grid=(grid_n,),
            in_specs=in_specs,
            out_specs=pl.BlockSpec((1, TB), lambda i: (0, i)),
            compiler_params=pltpu.CompilerParams(
                dimension_semantics=("parallel",)),
            cost_estimate=cost,
        )(xt, *weights, bias_pack)
        return out[:, :B].T                                 # (B, 1) logits

    return fwd


# ----------------------------- pure-JAX reference (unfolded, f32) ------------
def _bn_eval(x, g, be, m, v):
    return (x - m) * jax.lax.rsqrt(v + EPS) * g + be


def _linear(x, w, b):          # PyTorch layout: w (dout, din)
    return x @ w.T + b


def _encoder_ref(x, layers):
    for (w, b, g, be, m, v) in layers:
        x = jnp.maximum(_bn_eval(_linear(x, w, b), g, be, m, v), 0.0)
    return x


def _attention_ref(x, p):
    w1, b1, w2, b2 = p
    h = jnp.maximum(_linear(x, w1, b1), 0.0)
    return jax.nn.sigmoid(_linear(h, w2, b2))


def forward_ref(x, deep_indices, rad_indices, p):
    xd = _take_cols(x, deep_indices)
    xr = _take_cols(x, rad_indices)
    d_enc = _encoder_ref(xd, p["deep_layers"])
    r_enc = _encoder_ref(xr, p["rad_layers"])
    fused = jnp.concatenate([d_enc * _attention_ref(d_enc, p["deep_attn"]),
                             r_enc * _attention_ref(r_enc, p["rad_attn"])], axis=1)
    h = _bn_eval(fused, *p["cls_bn0"])
    h = _encoder_ref(h, p["cls_hidden"])
    wf, bf = p["cls_final"]
    return _linear(h, wf, bf)


# ----------------------------- main -----------------------------
if __name__ == "__main__":
    key = jax.random.PRNGKey(0)
    k_x, k_p = jax.random.split(key)

    B = 8
    input_dim = 24
    deep_indices = list(range(0, 16))      # 16 deep features
    rad_indices = list(range(16, 24))      # 8 radiomics features
    deep_encoder_dims = [32, 16]
    rad_encoder_dims = [32, 16]
    attention_dim = 32
    classifier_dims = [32]
    # dropout_rate = 0.1 -> identity in eval mode

    x = jax.random.normal(k_x, (B, input_dim), jnp.float32)
    params = init_params(k_p, len(deep_indices), len(rad_indices),
                         deep_encoder_dims, rad_encoder_dims,
                         attention_dim, classifier_dims)

    fwd = build_forward(params, deep_indices, rad_indices)   # fold once, jit
    logits = jax.block_until_ready(fwd(x))
    ref = jax.block_until_ready(forward_ref(x, deep_indices, rad_indices, params))

    assert logits.shape == (B, 1), logits.shape
    # bf16 MXU operands (f32 accumulation) -> relaxed tolerance vs f32 reference.
    assert jnp.allclose(logits, ref, atol=5e-2, rtol=5e-2), (logits, ref)

    print("KERNEL_OK")
</pallas_src>

<mosaic_0001>
module attributes {stable_mosaic.version = 11 : i64} {
  func.func @kernel(%arg0: i32, %arg1: memref<24x128xbf16, #tpu.memory_space<vmem>>, %arg2: memref<64x24xbf16, #tpu.memory_space<vmem>>, %arg3: memref<32x64xbf16, #tpu.memory_space<vmem>>, %arg4: memref<64x32xbf16, #tpu.memory_space<vmem>>, %arg5: memref<32x64xbf16, #tpu.memory_space<vmem>>, %arg6: memref<32x32xbf16, #tpu.memory_space<vmem>>, %arg7: memref<8x32xbf16, #tpu.memory_space<vmem>>, %arg8: memref<232x1xf32, #tpu.memory_space<vmem>>, %arg9: memref<1x128xf32, #tpu.memory_space<vmem>>) attributes {dimension_semantics = [#tpu.dimension_semantics<parallel>], iteration_bounds = array<i64: 1>, scalar_prefetch = 0 : i64, scratch_operands = 0 : i64, tpu.core_type = #tpu.core_type<tc>, window_params = [{transform_indices = @transform_0, window_bounds = array<i64: 24, 128>}, {pipeline_mode = #tpu.pipeline_mode<synchronous>, transform_indices = @transform_1, window_bounds = array<i64: 64, 24>}, {pipeline_mode = #tpu.pipeline_mode<synchronous>, transform_indices = @transform_2, window_bounds = array<i64: 32, 64>}, {pipeline_mode = #tpu.pipeline_mode<synchronous>, transform_indices = @transform_3, window_bounds = array<i64: 64, 32>}, {pipeline_mode = #tpu.pipeline_mode<synchronous>, transform_indices = @transform_4, window_bounds = array<i64: 32, 64>}, {pipeline_mode = #tpu.pipeline_mode<synchronous>, transform_indices = @transform_5, window_bounds = array<i64: 32, 32>}, {pipeline_mode = #tpu.pipeline_mode<synchronous>, transform_indices = @transform_6, window_bounds = array<i64: 8, 32>}, {pipeline_mode = #tpu.pipeline_mode<synchronous>, transform_indices = @transform_7, window_bounds = array<i64: 232, 1>}, {transform_indices = @transform_8, window_bounds = array<i64: 1, 128>}]} {
    %c0 = arith.constant 0 : index
    %c0_0 = arith.constant 0 : index
    %0 = vector.load %arg1[%c0, %c0_0] : memref<24x128xbf16, #tpu.memory_space<vmem>>, vector<24x128xbf16>
    %c0_1 = arith.constant 0 : index
    %c0_2 = arith.constant 0 : index
    %1 = vector.load %arg2[%c0_1, %c0_2] : memref<64x24xbf16, #tpu.memory_space<vmem>>, vector<64x24xbf16>
    %c0_3 = arith.constant 0 : index
    %c0_4 = arith.constant 0 : index
    %2 = vector.load %arg8[%c0_3, %c0_4] : memref<232x1xf32, #tpu.memory_space<vmem>>, vector<64x1xf32>
    %cst = arith.constant dense<0.000000e+00> : vector<64x128xf32>
    %3 = tpu.matmul %1, %0, %cst {dimension_numbers = #tpu.dot_dimension_numbers<[1], [0], [0], [1], [0, 0, 1, 1], [], []>} : vector<64x24xbf16>, vector<24x128xbf16>, vector<64x128xf32> -> vector<64x128xf32>
    %4 = vector.broadcast %2 : vector<64x1xf32> to vector<64x128xf32>
    %5 = arith.addf %3, %4 : vector<64x128xf32>
    %cst_5 = arith.constant 0.000000e+00 : f32
    %6 = vector.broadcast %cst_5 : f32 to vector<64x128xf32>
    %7 = arith.maximumf %5, %6 : vector<64x128xf32>
    %8 = arith.truncf %7 : vector<64x128xf32> to vector<64x128xbf16>
    %c0_6 = arith.constant 0 : index
    %c0_7 = arith.constant 0 : index
    %9 = vector.load %arg3[%c0_6, %c0_7] : memref<32x64xbf16, #tpu.memory_space<vmem>>, vector<32x64xbf16>
    %c64 = arith.constant 64 : index
    %c0_8 = arith.constant 0 : index
    %10 = vector.load %arg8[%c64, %c0_8] : memref<232x1xf32, #tpu.memory_space<vmem>>, vector<32x1xf32>
    %cst_9 = arith.constant dense<0.000000e+00> : vector<32x128xf32>
    %11 = tpu.matmul %9, %8, %cst_9 {dimension_numbers = #tpu.dot_dimension_numbers<[1], [0], [0], [1], [0, 0, 1, 1], [], []>} : vector<32x64xbf16>, vector<64x128xbf16>, vector<32x128xf32> -> vector<32x128xf32>
    %12 = vector.broadcast %10 : vector<32x1xf32> to vector<32x128xf32>
    %13 = arith.addf %11, %12 : vector<32x128xf32>
    %cst_10 = arith.constant 0.000000e+00 : f32
    %14 = vector.broadcast %cst_10 : f32 to vector<32x128xf32>
    %15 = arith.maximumf %13, %14 : vector<32x128xf32>
    %16 = arith.truncf %15 : vector<32x128xf32> to vector<32x128xbf16>
    %c0_11 = arith.constant 0 : index
    %c0_12 = arith.constant 0 : index
    %17 = vector.load %arg4[%c0_11, %c0_12] : memref<64x32xbf16, #tpu.memory_space<vmem>>, vector<64x32xbf16>
    %c96 = arith.constant 96 : index
    %c0_13 = arith.constant 0 : index
    %18 = vector.load %arg8[%c96, %c0_13] : memref<232x1xf32, #tpu.memory_space<vmem>>, vector<64x1xf32>
    %cst_14 = arith.constant dense<0.000000e+00> : vector<64x128xf32>
    %19 = tpu.matmul %17, %16, %cst_14 {dimension_numbers = #tpu.dot_dimension_numbers<[1], [0], [0], [1], [0, 0, 1, 1], [], []>} : vector<64x32xbf16>, vector<32x128xbf16>, vector<64x128xf32> -> vector<64x128xf32>
    %20 = vector.broadcast %18 : vector<64x1xf32> to vector<64x128xf32>
    %21 = arith.addf %19, %20 : vector<64x128xf32>
    %cst_15 = arith.constant 0.000000e+00 : f32
    %22 = vector.broadcast %cst_15 : f32 to vector<64x128xf32>
    %23 = arith.maximumf %21, %22 : vector<64x128xf32>
    %24 = arith.truncf %23 : vector<64x128xf32> to vector<64x128xbf16>
    %c0_16 = arith.constant 0 : index
    %c0_17 = arith.constant 0 : index
    %25 = vector.load %arg5[%c0_16, %c0_17] : memref<32x64xbf16, #tpu.memory_space<vmem>>, vector<32x64xbf16>
    %c160 = arith.constant 160 : index
    %c0_18 = arith.constant 0 : index
    %26 = vector.load %arg8[%c160, %c0_18] : memref<232x1xf32, #tpu.memory_space<vmem>>, vector<32x1xf32>
    %cst_19 = arith.constant dense<0.000000e+00> : vector<32x128xf32>
    %27 = tpu.matmul %25, %24, %cst_19 {dimension_numbers = #tpu.dot_dimension_numbers<[1], [0], [0], [1], [0, 0, 1, 1], [], []>} : vector<32x64xbf16>, vector<64x128xbf16>, vector<32x128xf32> -> vector<32x128xf32>
    %28 = vector.broadcast %26 : vector<32x1xf32> to vector<32x128xf32>
    %29 = arith.addf %27, %28 : vector<32x128xf32>
    %cst_20 = arith.constant 0.000000e+00 : f32
    %30 = vector.broadcast %cst_20 : f32 to vector<32x128xf32>
    %31 = arith.subf %30, %29 : vector<32x128xf32>
    %32 = math.exp %31 : vector<32x128xf32>
    %cst_21 = arith.constant 1.000000e+00 : f32
    %33 = vector.broadcast %cst_21 : f32 to vector<32x128xf32>
    %34 = arith.addf %33, %32 : vector<32x128xf32>
    %35 = tpu.reciprocal %34 {approx = true} : vector<32x128xf32> -> vector<32x128xf32>
    %36 = arith.extf %16 : vector<32x128xbf16> to vector<32x128xf32>
    %37 = arith.mulf %36, %35 : vector<32x128xf32>
    %38 = arith.truncf %37 : vector<32x128xf32> to vector<32x128xbf16>
    %c0_22 = arith.constant 0 : index
    %c0_23 = arith.constant 0 : index
    %39 = vector.load %arg6[%c0_22, %c0_23] : memref<32x32xbf16, #tpu.memory_space<vmem>>, vector<32x32xbf16>
    %c192 = arith.constant 192 : index
    %c0_24 = arith.constant 0 : index
    %40 = vector.load %arg8[%c192, %c0_24] : memref<232x1xf32, #tpu.memory_space<vmem>>, vector<32x1xf32>
    %cst_25 = arith.constant dense<0.000000e+00> : vector<32x128xf32>
    %41 = tpu.matmul %39, %38, %cst_25 {dimension_numbers = #tpu.dot_dimension_numbers<[1], [0], [0], [1], [0, 0, 1, 1], [], []>} : vector<32x32xbf16>, vector<32x128xbf16>, vector<32x128xf32> -> vector<32x128xf32>
    %42 = vector.broadcast %40 : vector<32x1xf32> to vector<32x128xf32>
    %43 = arith.addf %41, %42 : vector<32x128xf32>
    %cst_26 = arith.constant 0.000000e+00 : f32
    %44 = vector.broadcast %cst_26 : f32 to vector<32x128xf32>
    %45 = arith.maximumf %43, %44 : vector<32x128xf32>
    %46 = arith.truncf %45 : vector<32x128xf32> to vector<32x128xbf16>
    %c0_27 = arith.constant 0 : index
    %c0_28 = arith.constant 0 : index
    %47 = vector.load %arg7[%c0_27, %c0_28] : memref<8x32xbf16, #tpu.memory_space<vmem>>, vector<8x32xbf16>
    %c224 = arith.constant 224 : index
    %c0_29 = arith.constant 0 : index
    %48 = vector.load %arg8[%c224, %c0_29] : memref<232x1xf32, #tpu.memory_space<vmem>>, vector<8x1xf32>
    %cst_30 = arith.constant dense<0.000000e+00> : vector<8x128xf32>
    %49 = tpu.matmul %47, %46, %cst_30 {dimension_numbers = #tpu.dot_dimension_numbers<[1], [0], [0], [1], [0, 0, 1, 1], [], []>} : vector<8x32xbf16>, vector<32x128xbf16>, vector<8x128xf32> -> vector<8x128xf32>
    %50 = vector.broadcast %48 : vector<8x1xf32> to vector<8x128xf32>
    %51 = arith.addf %49, %50 : vector<8x128xf32>
    %52 = vector.extract_strided_slice %51 {offsets = [0, 0], sizes = [1, 128], strides = [1, 1]} : vector<8x128xf32> to vector<1x128xf32>
    %c0_31 = arith.constant 0 : index
    %c0_32 = arith.constant 0 : index
    %53 = vector.load %arg9[%c0_31, %c0_32] : memref<1x128xf32, #tpu.memory_space<vmem>>, vector<1x128xf32>
    tpu.vector_store %arg9[%c0_31, %c0_32], %52 {strides = array<i32>} : memref<1x128xf32, #tpu.memory_space<vmem>>, vector<1x128xf32>,
    return
  }
  func.func @transform_0(%arg0: i32) -> (i32, i32) {
    %c0_i32 = arith.constant 0 : i32
    %c0_i32_0 = arith.constant 0 : i32
    return %c0_i32, %arg0 : i32, i32
  }
  func.func @transform_1(%arg0: i32) -> (i32, i32) {
    %c0_i32 = arith.constant 0 : i32
    %c0_i32_0 = arith.constant 0 : i32
    %c0_i32_1 = arith.constant 0 : i32
    return %c0_i32, %c0_i32_0 : i32, i32
  }
  func.func @transform_2(%arg0: i32) -> (i32, i32) {
    %c0_i32 = arith.constant 0 : i32
    %c0_i32_0 = arith.constant 0 : i32
    %c0_i32_1 = arith.constant 0 : i32
    return %c0_i32, %c0_i32_0 : i32, i32
  }
  func.func @transform_3(%arg0: i32) -> (i32, i32) {
    %c0_i32 = arith.constant 0 : i32
    %c0_i32_0 = arith.constant 0 : i32
    %c0_i32_1 = arith.constant 0 : i32
    return %c0_i32, %c0_i32_0 : i32, i32
  }
  func.func @transform_4(%arg0: i32) -> (i32, i32) {
    %c0_i32 = arith.constant 0 : i32
    %c0_i32_0 = arith.constant 0 : i32
    %c0_i32_1 = arith.constant 0 : i32
    return %c0_i32, %c0_i32_0 : i32, i32
  }
  func.func @transform_5(%arg0: i32) -> (i32, i32) {
    %c0_i32 = arith.constant 0 : i32
    %c0_i32_0 = arith.constant 0 : i32
    %c0_i32_1 = arith.constant 0 : i32
    return %c0_i32, %c0_i32_0 : i32, i32
  }
  func.func @transform_6(%arg0: i32) -> (i32, i32) {
    %c0_i32 = arith.constant 0 : i32
    %c0_i32_0 = arith.constant 0 : i32
    %c0_i32_1 = arith.constant 0 : i32
    return %c0_i32, %c0_i32_0 : i32, i32
  }
  func.func @transform_7(%arg0: i32) -> (i32, i32) {
    %c0_i32 = arith.constant 0 : i32
    %c0_i32_0 = arith.constant 0 : i32
    %c0_i32_1 = arith.constant 0 : i32
    return %c0_i32, %c0_i32_0 : i32, i32
  }
  func.func @transform_8(%arg0: i32) -> (i32, i32) {
    %c0_i32 = arith.constant 0 : i32
    %c0_i32_0 = arith.constant 0 : i32
    return %c0_i32, %arg0 : i32, i32
  }
}

</mosaic_0001>

<llo_original>
// kernel: fwd.1
$region0: #{fwd.1}
  #allocation0 [shape = 'u32[]', space=smem, size = 0x4, offset = 0x4, fixed_abs, tag = 'smem constant byte address 0x4 - core index']
  #allocation1 [shape = 'u32[144,128]{1,0:T(1,128)}', space=vmem, size = 0x12000, scoped, tag = 'internal scratch']
  %s0 = inlined_call_operand.vmem [shape: bf16[24,128], index: 0, kind: input, shape index: {}]
  %s1 = inlined_call_operand.hbm [shape: bf16[64,24], index: 1, kind: input, shape index: {}]
  %s2 = inlined_call_operand.hbm [shape: bf16[32,64], index: 2, kind: input, shape index: {}]
  %s3 = inlined_call_operand.vmem [shape: bf16[64,32], index: 3, kind: input, shape index: {}]
  %s4 = inlined_call_operand.hbm [shape: bf16[32,64], index: 4, kind: input, shape index: {}]
  %s5 = inlined_call_operand.vmem [shape: bf16[32,32], index: 5, kind: input, shape index: {}]
  %s6 = inlined_call_operand.vmem [shape: bf16[8,32], index: 6, kind: input, shape index: {}]
  %s7 = inlined_call_operand.hbm [shape: f32[232,1], index: 7, kind: input, shape index: {}]
  %s8 = inlined_call_operand.vmem [shape: f32[1,128], index: 8, kind: output, shape index: {}]
  %s9 = sld [smem:[#allocation0]]
  $region58: #{fwd.1} parent=0
    _
  %s11 = ssub.s32 1, %s9
  %s12 = scalar_select 0, %s11, %s9
  $region1: #{fwd.1} parent=0
    #allocation2 [shape = 'u8[16384]{0}', space=vmem, size = 0x4000, scoped, tag = 'input window, operand 1, single buffered']
    #allocation3 [shape = 's32[1]{0}', space=sflag, size = 0x4, scoped, tag = 'scoped memory for fwd.1']
    #allocation4 [shape = 'u8[8192]{0}', space=vmem, size = 0x2000, scoped, tag = 'input window, operand 2, single buffered']
    #allocation5 [shape = 's32[1]{0}', space=sflag, size = 0x4, scoped, tag = 'scoped memory for fwd.1']
    #allocation6 [shape = 'u8[8192]{0}', space=vmem, size = 0x2000, scoped, tag = 'input window, operand 4, single buffered']
    #allocation7 [shape = 'u8[118784]{0}', space=vmem, size = 0x1d000, scoped, tag = 'input window, operand 7, single buffered']
    #allocation8 [shape = 's32[1]{0}', space=sflag, size = 0x4, scoped, tag = 'scoped memory for fwd.1']
    %13 = vsyncpa [#allocation3], 0
    %14 = vsyncpa [#allocation5], 0
    %15 = vsyncpa [#allocation8], 0
    // Predicated region
    $region2: #{fwd.1} parent=1 // pred_check
      _
    $region3: #{fwd.1} parent=1 // pred_check_branch
      %17 = sbr.rel (0) target = $region5
    $region4: #{fwd.1} parent=1 // pred_region
      _
    $region5: #{fwd.1} parent=1 // pred_fallthru
      _
    // Predicated region
    $region6: #{fwd.1} parent=1 // pred_check
      _
    $region7: #{fwd.1} parent=1 // pred_check_branch
      %19 = sbr.rel (0) target = $region9
    $region8: #{fwd.1} parent=1 // pred_region
      %s21 = ssub.s32 512, 512
      %22 = vsyncadd [#allocation3], %s21
      %s23 = sshll.u32 [#allocation2], 4
      %s24 = int_to_ptr.vmem [resolvable:$true] %s23
      %29 = dma.hbm_to_vmem [thread:$0]  %s1, 512, %s24, [#allocation3], 64, 64, 4
    $region9: #{fwd.1} parent=1 // pred_fallthru
      _
    // Predicated region
    $region10: #{fwd.1} parent=1 // pred_check
      _
    $region11: #{fwd.1} parent=1 // pred_check_branch
      %31 = sbr.rel (0) target = $region13
    $region12: #{fwd.1} parent=1 // pred_region
      %s33 = ssub.s32 256, 256
      %34 = vsyncadd [#allocation5], %s33
      %s35 = sshll.u32 [#allocation4], 4
      %s36 = int_to_ptr.vmem [resolvable:$true] %s35
      %41 = dma.hbm_to_vmem [thread:$0]  %s2, 256, %s36, [#allocation5], 64, 64, 4
    $region13: #{fwd.1} parent=1 // pred_fallthru
      _
    // Predicated region
    $region14: #{fwd.1} parent=1 // pred_check
      _
    $region15: #{fwd.1} parent=1 // pred_check_branch
      %43 = sbr.rel (0) target = $region17
    $region16: #{fwd.1} parent=1 // pred_region
      _
    $region17: #{fwd.1} parent=1 // pred_fallthru
      _
    // Predicated region
    $region18: #{fwd.1} parent=1 // pred_check
      _
    $region19: #{fwd.1} parent=1 // pred_check_branch
      %45 = sbr.rel (0) target = $region21
    $region20: #{fwd.1} parent=1 // pred_region
      %s47 = ssub.s32 256, 256
      %48 = vsyncadd [#allocation5], %s47
      %s49 = sshll.u32 [#allocation6], 4
      %s50 = int_to_ptr.vmem [resolvable:$true] %s49
      %55 = dma.hbm_to_vmem [thread:$0]  %s4, 256, %s50, [#allocation5], 64, 64, 4
    $region21: #{fwd.1} parent=1 // pred_fallthru
      _
    // Predicated region
    $region22: #{fwd.1} parent=1 // pred_check
      _
    $region23: #{fwd.1} parent=1 // pred_check_branch
      %57 = sbr.rel (0) target = $region25
    $region24: #{fwd.1} parent=1 // pred_region
      _
    $region25: #{fwd.1} parent=1 // pred_fallthru
      _
    // Predicated region
    $region26: #{fwd.1} parent=1 // pred_check
      _
    $region27: #{fwd.1} parent=1 // pred_check_branch
      %59 = sbr.rel (0) target = $region29
    $region28: #{fwd.1} parent=1 // pred_region
      _
    $region29: #{fwd.1} parent=1 // pred_fallthru
      _
    // Predicated region
    $region30: #{fwd.1} parent=1 // pred_check
      _
    $region31: #{fwd.1} parent=1 // pred_check_branch
      %61 = sbr.rel (0) target = $region33
    $region32: #{fwd.1} parent=1 // pred_region
      %s63 = ssub.s32 3712, 3712
      %64 = vsyncadd [#allocation8], %s63
      %s65 = sshll.u32 [#allocation7], 4
      %s66 = int_to_ptr.vmem [resolvable:$true] %s65
      %71 = dma.hbm_to_vmem [thread:$0]  %s7, 3712, %s66, [#allocation8], 128, 128, 8
    $region33: #{fwd.1} parent=1 // pred_fallthru
      _
    // Predicated region
    $region34: #{fwd.1} parent=1 // pred_check
      _
    $region35: #{fwd.1} parent=1 // pred_check_branch
      %73 = sbr.rel (0) target = $region37
    $region36: #{fwd.1} parent=1 // pred_region
      %74 = dma.done [#allocation3], 512
    $region37: #{fwd.1} parent=1 // pred_fallthru
      _
    // Predicated region
    $region38: #{fwd.1} parent=1 // pred_check
      _
    $region39: #{fwd.1} parent=1 // pred_check_branch
      %76 = sbr.rel (0) target = $region41
    $region40: #{fwd.1} parent=1 // pred_region
      %77 = dma.done [#allocation5], 256
    $region41: #{fwd.1} parent=1 // pred_fallthru
      _
    // Predicated region
    $region42: #{fwd.1} parent=1 // pred_check
      _
    $region43: #{fwd.1} parent=1 // pred_check_branch
      %79 = sbr.rel (0) target = $region45
    $region44: #{fwd.1} parent=1 // pred_region
      %80 = dma.done [#allocation5], 256
    $region45: #{fwd.1} parent=1 // pred_fallthru
      _
    // Predicated region
    $region46: #{fwd.1} parent=1 // pred_check
      _
    $region47: #{fwd.1} parent=1 // pred_check_branch
      %82 = sbr.rel (0) target = $region49
    $region48: #{fwd.1} parent=1 // pred_region
      %83 = dma.done [#allocation8], 3712
    $region49: #{fwd.1} parent=1 // pred_fallthru
      _
    %v85 = vld [vmem:[%s0] sm:$0xf]
    %v86 = vld [vmem:[%s0 + $0x4] sm:$0xf]
    %v87 = vld [vmem:[%s0 + $0x8] sm:$0xf]
    %v88 = vld [vmem:[#allocation2] sm:$0xf]
    %v89 = vld [vmem:[#allocation2 + $0x4] sm:$0xf]
    %v90 = vld [vmem:[#allocation2 + $0x8] sm:$0xf]
    %v91 = vld [vmem:[#allocation2 + $0xc] sm:$0xf]
    %v92 = vld [vmem:[#allocation2 + $0x10] sm:$0xf]
    %v93 = vld [vmem:[#allocation2 + $0x14] sm:$0xf]
    %v94 = vld [vmem:[#allocation2 + $0x18] sm:$0xf]
    %v95 = vld [vmem:[#allocation2 + $0x1c] sm:$0xf]
    %v96 = vld [vmem:[#allocation7] sm:$0xff]
    %v97 = vld [vmem:[#allocation7 + $0x8] sm:$0xff]
    %v98 = vld [vmem:[#allocation7 + $0x10] sm:$0xff]
    %v99 = vld [vmem:[#allocation7 + $0x18] sm:$0xff]
    %v100 = vld [vmem:[#allocation7 + $0x20] sm:$0xff]
    %v101 = vld [vmem:[#allocation7 + $0x28] sm:$0xff]
    %v102 = vld [vmem:[#allocation7 + $0x30] sm:$0xff]
    %v103 = vld [vmem:[#allocation7 + $0x38] sm:$0xff]
    %105 = vset.pattern.permute.xlu0 0
    %106 = vperm.xlu0 %105, %v96
    %v107 = vpop.permute.xlu0 %106
    %110 = vset.pattern.permute.xlu0 0
    %111 = vperm.xlu0 %110, %v97
    %v112 = vpop.permute.xlu0 %111
    %115 = vset.pattern.permute.xlu0 0
    %116 = vperm.xlu0 %115, %v98
    %v117 = vpop.permute.xlu0 %116
    %120 = vset.pattern.permute.xlu0 0
    %121 = vperm.xlu0 %120, %v99
    %v122 = vpop.permute.xlu0 %121
    %125 = vset.pattern.permute.xlu0 0
    %126 = vperm.xlu0 %125, %v100
    %v127 = vpop.permute.xlu0 %126
    %130 = vset.pattern.permute.xlu0 0
    %131 = vperm.xlu0 %130, %v101
    %v132 = vpop.permute.xlu0 %131
    %135 = vset.pattern.permute.xlu0 0
    %136 = vperm.xlu0 %135, %v102
    %v137 = vpop.permute.xlu0 %136
    %140 = vset.pattern.permute.xlu0 0
    %141 = vperm.xlu0 %140, %v103
    %v142 = vpop.permute.xlu0 %141
    %v152 = vunpack.c.l.b16 %v88
    %v153 = vunpack.c.l.b16 %v89
    %v154 = vunpack.c.l.b16 %v90
    %v155 = vunpack.c.l.b16 %v91
    %v156 = vunpack.c.l.b16 %v92
    %v157 = vunpack.c.l.b16 %v93
    %v158 = vunpack.c.l.b16 %v94
    %v159 = vunpack.c.l.b16 %v95
    %v160 = vpack.c.b16 %v153, %v152
    %v161 = vpack.c.b16 %v155, %v154
    %v162 = vpack.c.b16 %v157, %v156
    %v163 = vpack.c.b16 %v159, %v158
    %v167 = vunpack.c.l.b16 %v85
    %v168 = vunpack.c.l.b16 %v86
    %v169 = vunpack.c.l.b16 %v87
    %v170 = vpack.c.b16 %v168, %v167
    %v171 = vpack.c.b16 %v169, %v169
    %vm173 = vcmask 195584
    %v175 = vsel %vm173, %v160, 0
    %v178 = vsel %vm173, %v161, 0
    %v181 = vsel %vm173, %v162, 0
    %v184 = vsel %vm173, %v163, 0
    %vm186 = vcmask 1043456
    %v188 = vsel %vm186, %v171, 0
    %190 = vmatprep.subr.bf16.mxu0 0
    %191 = vmatpush1.bf16.msra.mxu0 0
    %192 = vmatprep.subr.bf16.mxu0 0
    %193 = vmatpush1.bf16.msra.mxu0 0
    %194 = vmatprep.subr.bf16.mxu0 0
    %195 = vmatpush1.bf16.msra.mxu0 0
    %196 = vmatprep.subr.bf16.mxu0 0
    %197 = vmatpush1.bf16.msra.mxu0 0
    %198 = vmatprep.subr.bf16.mxu0 0
    %199 = vmatpush1.bf16.msra.mxu0 0
    %200 = vmatprep.subr.bf16.mxu0 0
    %201 = vmatpush1.bf16.msra.mxu0 0
    %202 = vmatprep.subr.bf16.mxu0 0
    %203 = vmatpush1.bf16.msra.mxu0 %v188
    %204 = vmatprep.subr.bf16.mxu0 0
    %205 = vmatpush1.bf16.msra.mxu0 %v170
    %206 = vmatprep.subr.bf16.mxu0 0
    %207 = vmatpush2.bf16.msra.mxu0 0
    %208 = vmatprep.subr.bf16.mxu0 0
    %209 = vmatpush2.bf16.msra.mxu0 0
    %210 = vmatprep.subr.bf16.mxu0 0
    %211 = vmatpush2.bf16.msra.mxu0 0
    %212 = vmatprep.subr.bf16.mxu0 0
    %213 = vmatpush2.bf16.msra.mxu0 0
    %214 = vmatprep.subr.bf16.mxu0 0
    %215 = vmatpush2.bf16.msra.mxu0 0
    %216 = vmatprep.subr.bf16.mxu0 0
    %217 = vmatpush2.bf16.msra.mxu0 0
    %218 = vmatprep.subr.bf16.mxu0 0
    %219 = vmatpush2.bf16.msra.mxu0 0
    %220 = vmatprep.subr.bf16.mxu0 0
    %221 = vmatpush2.bf16.msra.mxu0 0
    %222 = vmatprep.mubr.bf16.mxu0 0
    %223 = vmatmul.mubr.bf16.gmra.mxu0 %v175
    %v224 = vpop.f32.mrf.mxu0
    %v225 = vadd.f32 %v107, %v224
    %v226 = vpop.f32.mrf.mxu0
    %v227 = vpop.f32.mrf.mxu0
    %v228 = vadd.f32 %v112, %v227
    %v229 = vpop.f32.mrf.mxu0
    %230 = vmatprep.mubr.bf16.mxu0 0
    %231 = vmatmul.mubr.bf16.gmra.mxu0 %v178
    %v232 = vpop.f32.mrf.mxu0
    %v233 = vadd.f32 %v117, %v232
    %v234 = vpop.f32.mrf.mxu0
    %v235 = vpop.f32.mrf.mxu0
    %v236 = vadd.f32 %v122, %v235
    %v237 = vpop.f32.mrf.mxu0
    %238 = vmatprep.mubr.bf16.mxu0 0
    %239 = vmatmul.mubr.bf16.gmra.mxu0 %v181
    %v240 = vpop.f32.mrf.mxu0
    %v241 = vadd.f32 %v127, %v240
    %v242 = vpop.f32.mrf.mxu0
    %v243 = vpop.f32.mrf.mxu0
    %v244 = vadd.f32 %v132, %v243
    %v245 = vpop.f32.mrf.mxu0
    %246 = vmatprep.mubr.bf16.mxu0 0
    %247 = vmatmul.mubr.bf16.gmra.mxu0 %v184
    %v248 = vpop.f32.mrf.mxu0
    %v249 = vadd.f32 %v137, %v248
    %v250 = vpop.f32.mrf.mxu0
    %v251 = vpop.f32.mrf.mxu0
    %v252 = vadd.f32 %v142, %v251
    %v253 = vpop.f32.mrf.mxu0
    %254 = vdwg.mxu0
    %v255 = vmax.f32 %v225, 0.0
    %v256 = vmax.f32 %v228, 0.0
    %v257 = vmax.f32 %v233, 0.0
    %v258 = vmax.f32 %v236, 0.0
    %v259 = vmax.f32 %v241, 0.0
    %v260 = vmax.f32 %v244, 0.0
    %v261 = vmax.f32 %v249, 0.0
    %v262 = vmax.f32 %v252, 0.0
    %v263 = vpack.c.bf16 %v256, %v255
    %v264 = vpack.c.bf16 %v258, %v257
    %v265 = vpack.c.bf16 %v260, %v259
    %v266 = vpack.c.bf16 %v262, %v261
    %v267 = vld [vmem:[#allocation4] sm:$0xf]
    %v268 = vld [vmem:[#allocation4 + $0x4] sm:$0xf]
    %v269 = vld [vmem:[#allocation4 + $0x8] sm:$0xf]
    %v270 = vld [vmem:[#allocation4 + $0xc] sm:$0xf]
    %v271 = vld [vmem:[#allocation7 + $0x40] sm:$0xff]
    %v272 = vld [vmem:[#allocation7 + $0x48] sm:$0xff]
    %v273 = vld [vmem:[#allocation7 + $0x50] sm:$0xff]
    %v274 = vld [vmem:[#allocation7 + $0x58] sm:$0xff]
    %276 = vset.pattern.permute.xlu0 0
    %277 = vperm.xlu0 %276, %v271
    %v278 = vpop.permute.xlu0 %277
    %281 = vset.pattern.permute.xlu0 0
    %282 = vperm.xlu0 %281, %v272
    %v283 = vpop.permute.xlu0 %282
    %286 = vset.pattern.permute.xlu0 0
    %287 = vperm.xlu0 %286, %v273
    %v288 = vpop.permute.xlu0 %287
    %291 = vset.pattern.permute.xlu0 0
    %292 = vperm.xlu0 %291, %v274
    %v293 = vpop.permute.xlu0 %292
    %v299 = vunpack.c.l.b16 %v267
    %v300 = vunpack.c.l.b16 %v268
    %v301 = vunpack.c.l.b16 %v269
    %v302 = vunpack.c.l.b16 %v270
    %v303 = vpack.c.b16 %v300, %v299
    %v304 = vpack.c.b16 %v302, %v301
    %vm305 = vcmask 523264
    %v307 = vsel %vm305, %v303, 0
    %v310 = vsel %vm305, %v304, 0
    %312 = vmatprep.subr.bf16.mxu0 0
    %313 = vmatpush1.bf16.msra.mxu0 0
    %314 = vmatprep.subr.bf16.mxu0 0
    %315 = vmatpush1.bf16.msra.mxu0 0
    %316 = vmatprep.subr.bf16.mxu0 0
    %317 = vmatpush1.bf16.msra.mxu0 0
    %318 = vmatprep.subr.bf16.mxu0 0
    %319 = vmatpush1.bf16.msra.mxu0 0
    %320 = vmatprep.subr.bf16.mxu0 0
    %321 = vmatpush1.bf16.msra.mxu0 %v266
    %322 = vmatprep.subr.bf16.mxu0 0
    %323 = vmatpush1.bf16.msra.mxu0 %v265
    %324 = vmatprep.subr.bf16.mxu0 0
    %325 = vmatpush1.bf16.msra.mxu0 %v264
    %326 = vmatprep.subr.bf16.mxu0 0
    %327 = vmatpush1.bf16.msra.mxu0 %v263
    %328 = vmatprep.subr.bf16.mxu0 0
    %329 = vmatpush2.bf16.msra.mxu0 0
    %330 = vmatprep.subr.bf16.mxu0 0
    %331 = vmatpush2.bf16.msra.mxu0 0
    %332 = vmatprep.subr.bf16.mxu0 0
    %333 = vmatpush2.bf16.msra.mxu0 0
    %334 = vmatprep.subr.bf16.mxu0 0
    %335 = vmatpush2.bf16.msra.mxu0 0
    %336 = vmatprep.subr.bf16.mxu0 0
    %337 = vmatpush2.bf16.msra.mxu0 0
    %338 = vmatprep.subr.bf16.mxu0 0
    %339 = vmatpush2.bf16.msra.mxu0 0
    %340 = vmatprep.subr.bf16.mxu0 0
    %341 = vmatpush2.bf16.msra.mxu0 0
    %342 = vmatprep.subr.bf16.mxu0 0
    %343 = vmatpush2.bf16.msra.mxu0 0
    %344 = vmatprep.mubr.bf16.mxu0 0
    %345 = vmatmul.mubr.bf16.gmra.mxu0 %v307
    %v346 = vpop.f32.mrf.mxu0
    %v347 = vadd.f32 %v278, %v346
    %v348 = vpop.f32.mrf.mxu0
    %v349 = vpop.f32.mrf.mxu0
    %v350 = vadd.f32 %v283, %v349
    %v351 = vpop.f32.mrf.mxu0
    %352 = vmatprep.mubr.bf16.mxu0 0
    %353 = vmatmul.mubr.bf16.gmra.mxu0 %v310
    %v354 = vpop.f32.mrf.mxu0
    %v355 = vadd.f32 %v288, %v354
    %v356 = vpop.f32.mrf.mxu0
    %v357 = vpop.f32.mrf.mxu0
    %v358 = vadd.f32 %v293, %v357
    %v359 = vpop.f32.mrf.mxu0
    %360 = vdwg.mxu0
    %v361 = vmax.f32 %v347, 0.0
    %v362 = vmax.f32 %v350, 0.0
    %v363 = vmax.f32 %v355, 0.0
    %v364 = vmax.f32 %v358, 0.0
    %v365 = vpack.c.bf16 %v362, %v361
    %v366 = vpack.c.bf16 %v364, %v363
    %v367 = vld [vmem:[%s3] sm:$0xf]
    %v368 = vld [vmem:[%s3 + $0x4] sm:$0xf]
    %v369 = vld [vmem:[%s3 + $0x8] sm:$0xf]
    %v370 = vld [vmem:[%s3 + $0xc] sm:$0xf]
    %v371 = vld [vmem:[%s3 + $0x10] sm:$0xf]
    %v372 = vld [vmem:[%s3 + $0x14] sm:$0xf]
    %v373 = vld [vmem:[%s3 + $0x18] sm:$0xf]
    %v374 = vld [vmem:[%s3 + $0x1c] sm:$0xf]
    %v375 = vld [vmem:[#allocation7 + $0x60] sm:$0xff]
    %v376 = vld [vmem:[#allocation7 + $0x68] sm:$0xff]
    %v377 = vld [vmem:[#allocation7 + $0x70] sm:$0xff]
    %v378 = vld [vmem:[#allocation7 + $0x78] sm:$0xff]
    %v379 = vld [vmem:[#allocation7 + $0x80] sm:$0xff]
    %v380 = vld [vmem:[#allocation7 + $0x88] sm:$0xff]
    %v381 = vld [vmem:[#allocation7 + $0x90] sm:$0xff]
    %v382 = vld [vmem:[#allocation7 + $0x98] sm:$0xff]
    %384 = vset.pattern.permute.xlu0 0
    %385 = vperm.xlu0 %384, %v375
    %v386 = vpop.permute.xlu0 %385
    %389 = vset.pattern.permute.xlu0 0
    %390 = vperm.xlu0 %389, %v376
    %v391 = vpop.permute.xlu0 %390
    %394 = vset.pattern.permute.xlu0 0
    %395 = vperm.xlu0 %394, %v377
    %v396 = vpop.permute.xlu0 %395
    %399 = vset.pattern.permute.xlu0 0
    %400 = vperm.xlu0 %399, %v378
    %v401 = vpop.permute.xlu0 %400
    %404 = vset.pattern.permute.xlu0 0
    %405 = vperm.xlu0 %404, %v379
    %v406 = vpop.permute.xlu0 %405
    %409 = vset.pattern.permute.xlu0 0
    %410 = vperm.xlu0 %409, %v380
    %v411 = vpop.permute.xlu0 %410
    %414 = vset.pattern.permute.xlu0 0
    %415 = vperm.xlu0 %414, %v381
    %v416 = vpop.permute.xlu0 %415
    %419 = vset.pattern.permute.xlu0 0
    %420 = vperm.xlu0 %419, %v382
    %v421 = vpop.permute.xlu0 %420
    %v431 = vunpack.c.l.b16 %v367
    %v432 = vunpack.c.l.b16 %v368
    %v433 = vunpack.c.l.b16 %v369
    %v434 = vunpack.c.l.b16 %v370
    %v435 = vunpack.c.l.b16 %v371
    %v436 = vunpack.c.l.b16 %v372
    %v437 = vunpack.c.l.b16 %v373
    %v438 = vunpack.c.l.b16 %v374
    %v439 = vpack.c.b16 %v432, %v431
    %v440 = vpack.c.b16 %v434, %v433
    %v441 = vpack.c.b16 %v436, %v435
    %v442 = vpack.c.b16 %v438, %v437
    %vm443 = vcmask 261120
    %v445 = vsel %vm443, %v439, 0
    %v448 = vsel %vm443, %v440, 0
    %v451 = vsel %vm443, %v441, 0
    %v454 = vsel %vm443, %v442, 0
    %456 = vmatprep.subr.bf16.mxu0 0
    %457 = vmatpush1.bf16.msra.mxu0 0
    %458 = vmatprep.subr.bf16.mxu0 0
    %459 = vmatpush1.bf16.msra.mxu0 0
    %460 = vmatprep.subr.bf16.mxu0 0
    %461 = vmatpush1.bf16.msra.mxu0 0
    %462 = vmatprep.subr.bf16.mxu0 0
    %463 = vmatpush1.bf16.msra.mxu0 0
    %464 = vmatprep.subr.bf16.mxu0 0
    %465 = vmatpush1.bf16.msra.mxu0 0
    %466 = vmatprep.subr.bf16.mxu0 0
    %467 = vmatpush1.bf16.msra.mxu0 0
    %468 = vmatprep.subr.bf16.mxu0 0
    %469 = vmatpush1.bf16.msra.mxu0 %v366
    %470 = vmatprep.subr.bf16.mxu0 0
    %471 = vmatpush1.bf16.msra.mxu0 %v365
    %472 = vmatprep.subr.bf16.mxu0 0
    %473 = vmatpush2.bf16.msra.mxu0 0
    %474 = vmatprep.subr.bf16.mxu0 0
    %475 = vmatpush2.bf16.msra.mxu0 0
    %476 = vmatprep.subr.bf16.mxu0 0
    %477 = vmatpush2.bf16.msra.mxu0 0
    %478 = vmatprep.subr.bf16.mxu0 0
    %479 = vmatpush2.bf16.msra.mxu0 0
    %480 = vmatprep.subr.bf16.mxu0 0
    %481 = vmatpush2.bf16.msra.mxu0 0
    %482 = vmatprep.subr.bf16.mxu0 0
    %483 = vmatpush2.bf16.msra.mxu0 0
    %484 = vmatprep.subr.bf16.mxu0 0
    %485 = vmatpush2.bf16.msra.mxu0 0
    %486 = vmatprep.subr.bf16.mxu0 0
    %487 = vmatpush2.bf16.msra.mxu0 0
    %488 = vmatprep.mubr.bf16.mxu0 0
    %489 = vmatmul.mubr.bf16.gmra.mxu0 %v445
    %v490 = vpop.f32.mrf.mxu0
    %v491 = vadd.f32 %v386, %v490
    %v492 = vpop.f32.mrf.mxu0
    %v493 = vpop.f32.mrf.mxu0
    %v494 = vadd.f32 %v391, %v493
    %v495 = vpop.f32.mrf.mxu0
    %496 = vmatprep.mubr.bf16.mxu0 0
    %497 = vmatmul.mubr.bf16.gmra.mxu0 %v448
    %v498 = vpop.f32.mrf.mxu0
    %v499 = vadd.f32 %v396, %v498
    %v500 = vpop.f32.mrf.mxu0
    %v501 = vpop.f32.mrf.mxu0
    %v502 = vadd.f32 %v401, %v501
    %v503 = vpop.f32.mrf.mxu0
    %504 = vmatprep.mubr.bf16.mxu0 0
    %505 = vmatmul.mubr.bf16.gmra.mxu0 %v451
    %v506 = vpop.f32.mrf.mxu0
    %v507 = vadd.f32 %v406, %v506
    %v508 = vpop.f32.mrf.mxu0
    %v509 = vpop.f32.mrf.mxu0
    %v510 = vadd.f32 %v411, %v509
    %v511 = vpop.f32.mrf.mxu0
    %512 = vmatprep.mubr.bf16.mxu0 0
    %513 = vmatmul.mubr.bf16.gmra.mxu0 %v454
    %v514 = vpop.f32.mrf.mxu0
    %v515 = vadd.f32 %v416, %v514
    %v516 = vpop.f32.mrf.mxu0
    %v517 = vpop.f32.mrf.mxu0
    %v518 = vadd.f32 %v421, %v517
    %v519 = vpop.f32.mrf.mxu0
    %520 = vdwg.mxu0
    %v521 = vmax.f32 %v491, 0.0
    %v522 = vmax.f32 %v494, 0.0
    %v523 = vmax.f32 %v499, 0.0
    %v524 = vmax.f32 %v502, 0.0
    %v525 = vmax.f32 %v507, 0.0
    %v526 = vmax.f32 %v510, 0.0
    %v527 = vmax.f32 %v515, 0.0
    %v528 = vmax.f32 %v518, 0.0
    %v529 = vpack.c.bf16 %v522, %v521
    %v530 = vpack.c.bf16 %v524, %v523
    %v531 = vpack.c.bf16 %v526, %v525
    %v532 = vpack.c.bf16 %v528, %v527
    %v533 = vld [vmem:[#allocation6] sm:$0xf]
    %v534 = vld [vmem:[#allocation6 + $0x4] sm:$0xf]
    %v535 = vld [vmem:[#allocation6 + $0x8] sm:$0xf]
    %v536 = vld [vmem:[#allocation6 + $0xc] sm:$0xf]
    %v537 = vld [vmem:[#allocation7 + $0xa0] sm:$0xff]
    %v538 = vld [vmem:[#allocation7 + $0xa8] sm:$0xff]
    %v539 = vld [vmem:[#allocation7 + $0xb0] sm:$0xff]
    %v540 = vld [vmem:[#allocation7 + $0xb8] sm:$0xff]
    %542 = vset.pattern.permute.xlu0 0
    %543 = vperm.xlu0 %542, %v537
    %v544 = vpop.permute.xlu0 %543
    %547 = vset.pattern.permute.xlu0 0
    %548 = vperm.xlu0 %547, %v538
    %v549 = vpop.permute.xlu0 %548
    %552 = vset.pattern.permute.xlu0 0
    %553 = vperm.xlu0 %552, %v539
    %v554 = vpop.permute.xlu0 %553
    %557 = vset.pattern.permute.xlu0 0
    %558 = vperm.xlu0 %557, %v540
    %v559 = vpop.permute.xlu0 %558
    %v565 = vunpack.c.l.b16 %v533
    %v566 = vunpack.c.l.b16 %v534
    %v567 = vunpack.c.l.b16 %v535
    %v568 = vunpack.c.l.b16 %v536
    %v569 = vpack.c.b16 %v566, %v565
    %v570 = vpack.c.b16 %v568, %v567
    %v572 = vsel %vm305, %v569, 0
    %v575 = vsel %vm305, %v570, 0
    %577 = vmatprep.subr.bf16.mxu0 0
    %578 = vmatpush1.bf16.msra.mxu0 0
    %579 = vmatprep.subr.bf16.mxu0 0
    %580 = vmatpush1.bf16.msra.mxu0 0
    %581 = vmatprep.subr.bf16.mxu0 0
    %582 = vmatpush1.bf16.msra.mxu0 0
    %583 = vmatprep.subr.bf16.mxu0 0
    %584 = vmatpush1.bf16.msra.mxu0 0
    %585 = vmatprep.subr.bf16.mxu0 0
    %586 = vmatpush1.bf16.msra.mxu0 %v532
    %587 = vmatprep.subr.bf16.mxu0 0
    %588 = vmatpush1.bf16.msra.mxu0 %v531
    %589 = vmatprep.subr.bf16.mxu0 0
    %590 = vmatpush1.bf16.msra.mxu0 %v530
    %591 = vmatprep.subr.bf16.mxu0 0
    %592 = vmatpush1.bf16.msra.mxu0 %v529
    %593 = vmatprep.subr.bf16.mxu0 0
    %594 = vmatpush2.bf16.msra.mxu0 0
    %595 = vmatprep.subr.bf16.mxu0 0
    %596 = vmatpush2.bf16.msra.mxu0 0
    %597 = vmatprep.subr.bf16.mxu0 0
    %598 = vmatpush2.bf16.msra.mxu0 0
    %599 = vmatprep.subr.bf16.mxu0 0
    %600 = vmatpush2.bf16.msra.mxu0 0
    %601 = vmatprep.subr.bf16.mxu0 0
    %602 = vmatpush2.bf16.msra.mxu0 0
    %603 = vmatprep.subr.bf16.mxu0 0
    %604 = vmatpush2.bf16.msra.mxu0 0
    %605 = vmatprep.subr.bf16.mxu0 0
    %606 = vmatpush2.bf16.msra.mxu0 0
    %607 = vmatprep.subr.bf16.mxu0 0
    %608 = vmatpush2.bf16.msra.mxu0 0
    %609 = vmatprep.mubr.bf16.mxu0 0
    %610 = vmatmul.mubr.bf16.gmra.mxu0 %v572
    %v611 = vpop.f32.mrf.mxu0
    %v612 = vadd.f32 %v544, %v611
    %v613 = vpop.f32.mrf.mxu0
    %v614 = vpop.f32.mrf.mxu0
    %v615 = vadd.f32 %v549, %v614
    %v616 = vpop.f32.mrf.mxu0
    %617 = vmatprep.mubr.bf16.mxu0 0
    %618 = vmatmul.mubr.bf16.gmra.mxu0 %v575
    %v619 = vpop.f32.mrf.mxu0
    %v620 = vadd.f32 %v554, %v619
    %v621 = vpop.f32.mrf.mxu0
    %v622 = vpop.f32.mrf.mxu0
    %v623 = vadd.f32 %v559, %v622
    %v624 = vpop.f32.mrf.mxu0
    %625 = vdwg.mxu0
    %v626 = vsub.f32 0.0, %v612
    %v627 = vsub.f32 0.0, %v615
    %v628 = vsub.f32 0.0, %v620
    %v629 = vsub.f32 0.0, %v623
    %v630 = vmul.f32 %v626, 1.442695
    %v631 = vpow.pop %v630
    %v632 = vmul.f32 %v627, 1.442695
    %v633 = vpow.pop %v632
    %v634 = vmul.f32 %v628, 1.442695
    %v635 = vpow.pop %v634
    %v636 = vmul.f32 %v629, 1.442695
    %v637 = vpow.pop %v636
    %v638 = vadd.f32 %v631, 1.0
    %v639 = vadd.f32 %v633, 1.0
    %v640 = vadd.f32 %v635, 1.0
    %v641 = vadd.f32 %v637, 1.0
    %v642 = vrcp.pop %v638
    %v643 = vrcp.pop %v639
    %v644 = vrcp.pop %v640
    %v645 = vrcp.pop %v641
    %v646 = vunpack.c.l.bf16 %v365
    %v647 = vunpack.c.h.bf16 %v365
    %v648 = vunpack.c.l.bf16 %v366
    %v649 = vunpack.c.h.bf16 %v366
    %v650 = vmul.f32 %v646, %v642
    %v651 = vmul.f32 %v647, %v643
    %v652 = vmul.f32 %v648, %v644
    %v653 = vmul.f32 %v649, %v645
    %v654 = vpack.c.bf16 %v651, %v650
    %v655 = vpack.c.bf16 %v653, %v652
    %v656 = vld [vmem:[%s5] sm:$0xf]
    %v657 = vld [vmem:[%s5 + $0x4] sm:$0xf]
    %v658 = vld [vmem:[%s5 + $0x8] sm:$0xf]
    %v659 = vld [vmem:[%s5 + $0xc] sm:$0xf]
    %v660 = vld [vmem:[#allocation7 + $0xc0] sm:$0xff]
    %v661 = vld [vmem:[#allocation7 + $0xc8] sm:$0xff]
    %v662 = vld [vmem:[#allocation7 + $0xd0] sm:$0xff]
    %v663 = vld [vmem:[#allocation7 + $0xd8] sm:$0xff]
    %665 = vset.pattern.permute.xlu0 0
    %666 = vperm.xlu0 %665, %v660
    %v667 = vpop.permute.xlu0 %666
    %670 = vset.pattern.permute.xlu0 0
    %671 = vperm.xlu0 %670, %v661
    %v672 = vpop.permute.xlu0 %671
    %675 = vset.pattern.permute.xlu0 0
    %676 = vperm.xlu0 %675, %v662
    %v677 = vpop.permute.xlu0 %676
    %680 = vset.pattern.permute.xlu0 0
    %681 = vperm.xlu0 %680, %v663
    %v682 = vpop.permute.xlu0 %681
    %v688 = vunpack.c.l.b16 %v656
    %v689 = vunpack.c.l.b16 %v657
    %v690 = vunpack.c.l.b16 %v658
    %v691 = vunpack.c.l.b16 %v659
    %v692 = vpack.c.b16 %v689, %v688
    %v693 = vpack.c.b16 %v691, %v690
    %v695 = vsel %vm443, %v692, 0
    %v698 = vsel %vm443, %v693, 0
    %700 = vmatprep.subr.bf16.mxu0 0
    %701 = vmatpush1.bf16.msra.mxu0 0
    %702 = vmatprep.subr.bf16.mxu0 0
    %703 = vmatpush1.bf16.msra.mxu0 0
    %704 = vmatprep.subr.bf16.mxu0 0
    %705 = vmatpush1.bf16.msra.mxu0 0
    %706 = vmatprep.subr.bf16.mxu0 0
    %707 = vmatpush1.bf16.msra.mxu0 0
    %708 = vmatprep.subr.bf16.mxu0 0
    %709 = vmatpush1.bf16.msra.mxu0 0
    %710 = vmatprep.subr.bf16.mxu0 0
    %711 = vmatpush1.bf16.msra.mxu0 0
    %712 = vmatprep.subr.bf16.mxu0 0
    %713 = vmatpush1.bf16.msra.mxu0 %v655
    %714 = vmatprep.subr.bf16.mxu0 0
    %715 = vmatpush1.bf16.msra.mxu0 %v654
    %716 = vmatprep.subr.bf16.mxu0 0
    %717 = vmatpush2.bf16.msra.mxu0 0
    %718 = vmatprep.subr.bf16.mxu0 0
    %719 = vmatpush2.bf16.msra.mxu0 0
    %720 = vmatprep.subr.bf16.mxu0 0
    %721 = vmatpush2.bf16.msra.mxu0 0
    %722 = vmatprep.subr.bf16.mxu0 0
    %723 = vmatpush2.bf16.msra.mxu0 0
    %724 = vmatprep.subr.bf16.mxu0 0
    %725 = vmatpush2.bf16.msra.mxu0 0
    %726 = vmatprep.subr.bf16.mxu0 0
    %727 = vmatpush2.bf16.msra.mxu0 0
    %728 = vmatprep.subr.bf16.mxu0 0
    %729 = vmatpush2.bf16.msra.mxu0 0
    %730 = vmatprep.subr.bf16.mxu0 0
    %731 = vmatpush2.bf16.msra.mxu0 0
    %732 = vmatprep.mubr.bf16.mxu0 0
    %733 = vmatmul.mubr.bf16.gmra.mxu0 %v695
    %v734 = vpop.f32.mrf.mxu0
    %v735 = vadd.f32 %v667, %v734
    %v736 = vpop.f32.mrf.mxu0
    %v737 = vpop.f32.mrf.mxu0
    %v738 = vadd.f32 %v672, %v737
    %v739 = vpop.f32.mrf.mxu0
    %740 = vmatprep.mubr.bf16.mxu0 0
    %741 = vmatmul.mubr.bf16.gmra.mxu0 %v698
    %v742 = vpop.f32.mrf.mxu0
    %v743 = vadd.f32 %v677, %v742
    %v744 = vpop.f32.mrf.mxu0
    %v745 = vpop.f32.mrf.mxu0
    %v746 = vadd.f32 %v682, %v745
    %v747 = vpop.f32.mrf.mxu0
    %748 = vdwg.mxu0
    %v749 = vmax.f32 %v735, 0.0
    %v750 = vmax.f32 %v738, 0.0
    %v751 = vmax.f32 %v743, 0.0
    %v752 = vmax.f32 %v746, 0.0
    %v753 = vpack.c.bf16 %v750, %v749
    %v754 = vpack.c.bf16 %v752, %v751
    %v755 = vld [vmem:[%s6] sm:$0xf]
    %v756 = vld [vmem:[#allocation7 + $0xe0] sm:$0xff]
    %758 = vset.pattern.permute.xlu0 0
    %759 = vperm.xlu0 %758, %v756
    %v760 = vpop.permute.xlu0 %759
    %v763 = vsel %vm443, %v755, 0
    %765 = vmatprep.subr.bf16.mxu0 0
    %766 = vmatpush1.bf16.msra.mxu0 0
    %767 = vmatprep.subr.bf16.mxu0 0
    %768 = vmatpush1.bf16.msra.mxu0 0
    %769 = vmatprep.subr.bf16.mxu0 0
    %770 = vmatpush1.bf16.msra.mxu0 0
    %771 = vmatprep.subr.bf16.mxu0 0
    %772 = vmatpush1.bf16.msra.mxu0 0
    %773 = vmatprep.subr.bf16.mxu0 0
    %774 = vmatpush1.bf16.msra.mxu0 0
    %775 = vmatprep.subr.bf16.mxu0 0
    %776 = vmatpush1.bf16.msra.mxu0 0
    %777 = vmatprep.subr.bf16.mxu0 0
    %778 = vmatpush1.bf16.msra.mxu0 %v754
    %779 = vmatprep.subr.bf16.mxu0 0
    %780 = vmatpush1.bf16.msra.mxu0 %v753
    %781 = vmatprep.subr.bf16.mxu0 0
    %782 = vmatpush2.bf16.msra.mxu0 0
    %783 = vmatprep.subr.bf16.mxu0 0
    %784 = vmatpush2.bf16.msra.mxu0 0
    %785 = vmatprep.subr.bf16.mxu0 0
    %786 = vmatpush2.bf16.msra.mxu0 0
    %787 = vmatprep.subr.bf16.mxu0 0
    %788 = vmatpush2.bf16.msra.mxu0 0
    %789 = vmatprep.subr.bf16.mxu0 0
    %790 = vmatpush2.bf16.msra.mxu0 0
    %791 = vmatprep.subr.bf16.mxu0 0
    %792 = vmatpush2.bf16.msra.mxu0 0
    %793 = vmatprep.subr.bf16.mxu0 0
    %794 = vmatpush2.bf16.msra.mxu0 0
    %795 = vmatprep.subr.bf16.mxu0 0
    %796 = vmatpush2.bf16.msra.mxu0 0
    %797 = vmatprep.mubr.bf16.mxu0 0
    %798 = vmatmul.mubr.bf16.gmra.mxu0 %v763
    %v799 = vpop.f32.mrf.mxu0
    %v800 = vadd.f32 %v760, %v799
    %v801 = vpop.f32.mrf.mxu0
    %v802 = vpop.f32.mrf.mxu0
    %v803 = vpop.f32.mrf.mxu0
    %804 = vdwg.mxu0
    %805 = vst [vmem:[%s8] sm:$0x1] %v800
    // Predicated region
    $region50: #{fwd.1} parent=1 // pred_check
      _
    $region51: #{fwd.1} parent=1 // pred_check_branch
      %807 = sbr.rel (0) target = $region53
    $region52: #{fwd.1} parent=1 // pred_region
      _
    $region53: #{fwd.1} parent=1 // pred_fallthru
      _
    // Predicated region
    $region54: #{fwd.1} parent=1 // pred_check
      _
    $region55: #{fwd.1} parent=1 // pred_check_branch
      %809 = sbr.rel (0) target = $region57
    $region56: #{fwd.1} parent=1 // pred_region
      _
    $region57: #{fwd.1} parent=1 // pred_fallthru
      _
    %810 = vsyncpa [#allocation3], 1
    %811 = vsyncpa [#allocation5], 1
    %812 = vsyncpa [#allocation8], 1

</llo_original>
